<compile_context>
chip_gen: v6e
topology: v6e:2x2x1
jax: 0.10.0
libtpu: 0.0.40
codegen_flags: <defaults>
</compile_context>

<pallas_src>
import functools

import jax
import jax.numpy as jnp
from jax.experimental import pallas as pl
from jax.experimental.pallas import tpu as pltpu

LANE = 128      # native lane width of a vreg
SUB = 16        # sublane-dense row multiple (bf16 packs 16 rows per vreg)
NEG_INF = -1e30


def _round_up(n, m):
    return (n + m - 1) // m * m


def mlp_softmax_kernel(x_ref, w1_ref, b1_ref, w2_ref, b2_ref, o_ref, *, out_feats):
    # linear1: bf16 operands on the MXU, f32 accumulation; bias + ReLU in f32.
    h = jnp.dot(x_ref[...], w1_ref[...], preferred_element_type=jnp.float32)
    h = jnp.maximum(h + b1_ref[...], 0.0)

    # linear2: cast activations to bf16 for the MXU, accumulate in f32.
    logits = jnp.dot(h.astype(jnp.bfloat16), w2_ref[...],
                     preferred_element_type=jnp.float32) + b2_ref[...]

    # Mask the lane-padded columns so they contribute 0 to the softmax.
    col = jax.lax.broadcasted_iota(jnp.int32, logits.shape, 1)
    logits = jnp.where(col < out_feats, logits, NEG_INF)

    # Numerically-stable softmax over the lane-dense last dim (f32 throughout).
    # Exact divide (not approx reciprocal) so each row sums to 1 to f32 accuracy.
    m = jnp.max(logits, axis=-1, keepdims=True)
    e = jnp.exp(logits - m)
    denom = jnp.sum(e, axis=-1, keepdims=True)
    o_ref[...] = (e / denom).astype(o_ref.dtype)


def mlp_forward(x, w1, b1, w2, b2):
    """x: (B, *) any trailing dims; flattened to (B, in_feats)."""
    B = x.shape[0]
    x2d = x.reshape(B, -1)
    in_feats = x2d.shape[1]
    h_feats = w1.shape[1]
    out_feats = w2.shape[1]

    # Pad batch to a sublane-dense multiple and output features to a full
    # 128-lane vreg so the MXU / VPU / store path run unmasked.
    b_pad = max(_round_up(B, SUB), SUB)
    out_pad = max(_round_up(out_feats, LANE), LANE)

    x_p = jnp.zeros((b_pad, in_feats), jnp.bfloat16).at[:B].set(
        x2d.astype(jnp.bfloat16))
    w1_b = w1.astype(jnp.bfloat16)
    w2_p = jnp.zeros((h_feats, out_pad), jnp.bfloat16).at[:, :out_feats].set(
        w2.astype(jnp.bfloat16))
    b1_f = b1.reshape(1, h_feats).astype(jnp.float32)
    b2_p = jnp.zeros((1, out_pad), jnp.float32).at[:, :out_feats].set(
        b2.reshape(1, out_feats).astype(jnp.float32))

    flops = 2 * b_pad * (in_feats * h_feats + h_feats * out_pad)
    bytes_accessed = (x_p.size * 2 + w1_b.size * 2 + w2_p.size * 2
                      + b1_f.size * 4 + b2_p.size * 4 + b_pad * out_pad * 4)

    out = pl.pallas_call(
        functools.partial(mlp_softmax_kernel, out_feats=out_feats),
        out_shape=jax.ShapeDtypeStruct((b_pad, out_pad), jnp.float32),
        in_specs=[pl.BlockSpec(memory_space=pltpu.MemorySpace.VMEM)] * 5,
        out_specs=pl.BlockSpec(memory_space=pltpu.MemorySpace.VMEM),
        cost_estimate=pl.CostEstimate(
            flops=flops,
            transcendentals=b_pad * out_pad,
            bytes_accessed=bytes_accessed),
    )(x_p, w1_b, b1_f, w2_p, b2_p)

    # Slice off the batch / lane padding.
    return out[:B, :out_feats]


def init_params(key, in_feats, h_feats, out_feats):
    """Deterministic init mirroring kaiming_normal_ (fan_in, gain=sqrt(2)) for
    the 2-D weights and PyTorch's default uniform init for biases."""
    k1, k2, k3, k4 = jax.random.split(key, 4)
    std1 = (2.0 / in_feats) ** 0.5
    std2 = (2.0 / h_feats) ** 0.5
    w1 = std1 * jax.random.normal(k1, (in_feats, h_feats), jnp.float32)
    w2 = std2 * jax.random.normal(k2, (h_feats, out_feats), jnp.float32)
    bnd1 = 1.0 / (in_feats ** 0.5)
    bnd2 = 1.0 / (h_feats ** 0.5)
    b1 = jax.random.uniform(k3, (1, h_feats), jnp.float32, -bnd1, bnd1)
    b2 = jax.random.uniform(k4, (1, out_feats), jnp.float32, -bnd2, bnd2)
    return w1, b1, w2, b2


if __name__ == "__main__":
    # Small shapes consistent with the module: input flattens to in_feats.
    B, C, H, W = 4, 4, 4, 2          # flatten -> in_feats = 32
    in_feats, h_feats, out_feats = C * H * W, 64, 16

    key = jax.random.PRNGKey(0)
    kx, kp = jax.random.split(key)
    x = jax.random.normal(kx, (B, C, H, W), jnp.float32)
    w1, b1, w2, b2 = init_params(kp, in_feats, h_feats, out_feats)

    out = mlp_forward(x, w1, b1, w2, b2)
    jax.block_until_ready(out)

    # Sanity check against pure-JAX f32 reference (bf16 matmul inputs warrant a
    # looser elementwise tolerance; rows must still sum to 1 since the softmax
    # normalization is exact f32).
    x2d = x.reshape(B, -1)
    ref = jax.nn.softmax(jnp.maximum(x2d @ w1 + b1, 0.0) @ w2 + b2, axis=-1)
    assert out.shape == (B, out_feats)
    assert jnp.allclose(out, ref, atol=2e-2, rtol=0.0), float(
        jnp.max(jnp.abs(out - ref)))
    assert jnp.allclose(jnp.sum(out, axis=-1), 1.0, atol=1e-3)

    print("KERNEL_OK")
</pallas_src>

<mosaic_0001>
module attributes {stable_mosaic.version = 11 : i64} {
  func.func @mlp_softmax_kernel(%arg0: memref<16x32xbf16, #tpu.memory_space<vmem>>, %arg1: memref<32x64xbf16, #tpu.memory_space<vmem>>, %arg2: memref<1x64xf32, #tpu.memory_space<vmem>>, %arg3: memref<64x128xbf16, #tpu.memory_space<vmem>>, %arg4: memref<1x128xf32, #tpu.memory_space<vmem>>, %arg5: memref<16x128xf32, #tpu.memory_space<vmem>>) attributes {dimension_semantics = [], scalar_prefetch = 0 : i64, scratch_operands = 0 : i64, tpu.core_type = #tpu.core_type<tc>} {
    %c0 = arith.constant 0 : index
    %c0_0 = arith.constant 0 : index
    %0 = vector.load %arg0[%c0, %c0_0] : memref<16x32xbf16, #tpu.memory_space<vmem>>, vector<16x32xbf16>
    %c0_1 = arith.constant 0 : index
    %c0_2 = arith.constant 0 : index
    %1 = vector.load %arg1[%c0_1, %c0_2] : memref<32x64xbf16, #tpu.memory_space<vmem>>, vector<32x64xbf16>
    %cst = arith.constant dense<0.000000e+00> : vector<16x64xf32>
    %2 = tpu.matmul %0, %1, %cst {dimension_numbers = #tpu.dot_dimension_numbers<[1], [0], [0], [1], [0, 0, 1, 1], [], []>} : vector<16x32xbf16>, vector<32x64xbf16>, vector<16x64xf32> -> vector<16x64xf32>
    %c0_3 = arith.constant 0 : index
    %c0_4 = arith.constant 0 : index
    %3 = vector.load %arg2[%c0_3, %c0_4] : memref<1x64xf32, #tpu.memory_space<vmem>>, vector<1x64xf32>
    %4 = vector.broadcast %3 : vector<1x64xf32> to vector<16x64xf32>
    %5 = arith.addf %2, %4 : vector<16x64xf32>
    %cst_5 = arith.constant 0.000000e+00 : f32
    %6 = vector.broadcast %cst_5 : f32 to vector<16x64xf32>
    %7 = arith.maximumf %5, %6 : vector<16x64xf32>
    %8 = arith.truncf %7 : vector<16x64xf32> to vector<16x64xbf16>
    %c0_6 = arith.constant 0 : index
    %c0_7 = arith.constant 0 : index
    %9 = vector.load %arg3[%c0_6, %c0_7] : memref<64x128xbf16, #tpu.memory_space<vmem>>, vector<64x128xbf16>
    %cst_8 = arith.constant dense<0.000000e+00> : vector<16x128xf32>
    %10 = tpu.matmul %8, %9, %cst_8 {dimension_numbers = #tpu.dot_dimension_numbers<[1], [0], [0], [1], [0, 0, 1, 1], [], []>} : vector<16x64xbf16>, vector<64x128xbf16>, vector<16x128xf32> -> vector<16x128xf32>
    %c0_9 = arith.constant 0 : index
    %c0_10 = arith.constant 0 : index
    %11 = vector.load %arg4[%c0_9, %c0_10] : memref<1x128xf32, #tpu.memory_space<vmem>>, vector<1x128xf32>
    %12 = vector.broadcast %11 : vector<1x128xf32> to vector<16x128xf32>
    %13 = arith.addf %10, %12 : vector<16x128xf32>
    %14 = tpu.iota {dimensions = array<i32: 1>} : vector<16x128xi32>
    %c16_i32 = arith.constant 16 : i32
    %15 = vector.broadcast %c16_i32 : i32 to vector<16x128xi32>
    %16 = arith.cmpi slt, %14, %15 : vector<16x128xi32>
    %cst_11 = arith.constant -1.000000e+30 : f32
    %17 = vector.broadcast %cst_11 : f32 to vector<16x128xf32>
    %18 = arith.select %16, %13, %17 : vector<16x128xi1>, vector<16x128xf32>
    %cst_12 = arith.constant dense<0xFF800000> : vector<16xf32>
    %19 = vector.multi_reduction <maximumf>, %18, %cst_12 [1] : vector<16x128xf32> to vector<16xf32>
    %20 = vector.shape_cast %19 : vector<16xf32> to vector<16x1xf32>
    %21 = vector.broadcast %20 : vector<16x1xf32> to vector<16x128xf32>
    %22 = arith.subf %18, %21 : vector<16x128xf32>
    %23 = math.exp %22 : vector<16x128xf32>
    %cst_13 = arith.constant dense<0.000000e+00> : vector<16xf32>
    %24 = vector.multi_reduction <add>, %23, %cst_13 [1] : vector<16x128xf32> to vector<16xf32>
    %25 = vector.shape_cast %24 : vector<16xf32> to vector<16x1xf32>
    %26 = vector.broadcast %25 : vector<16x1xf32> to vector<16x128xf32>
    %27 = arith.divf %23, %26 : vector<16x128xf32>
    %c0_14 = arith.constant 0 : index
    %c0_15 = arith.constant 0 : index
    %28 = vector.load %arg5[%c0_14, %c0_15] : memref<16x128xf32, #tpu.memory_space<vmem>>, vector<16x128xf32>
    tpu.vector_store %arg5[%c0_14, %c0_15], %27 {strides = array<i32>} : memref<16x128xf32, #tpu.memory_space<vmem>>, vector<16x128xf32>,
    return
  }
}

</mosaic_0001>

<llo_original>
// kernel: tpu_custom_call.1
$region0: #{tpu_custom_call.1}
  #allocation0 [shape = 'u32[]', space=smem, size = 0x4, offset = 0x4, fixed_abs, tag = 'smem constant byte address 0x4 - core index']
  #allocation1 [shape = 'u32[144,128]{1,0:T(1,128)}', space=vmem, size = 0x12000, scoped, tag = 'internal scratch']
  %s0 = inlined_call_operand.hbm [shape: bf16[16,32], index: 0, kind: input, shape index: {}]
  %s1 = inlined_call_operand.hbm [shape: bf16[32,64], index: 1, kind: input, shape index: {}]
  %s2 = inlined_call_operand.vmem [shape: f32[1,64], index: 2, kind: input, shape index: {}]
  %s3 = inlined_call_operand.hbm [shape: bf16[64,128], index: 3, kind: input, shape index: {}]
  %s4 = inlined_call_operand.vmem [shape: f32[1,128], index: 4, kind: input, shape index: {}]
  %s5 = inlined_call_operand.hbm [shape: f32[16,128], index: 5, kind: output, shape index: {}]
  %s6 = sld [smem:[#allocation0]]
  $region42: #{tpu_custom_call.1} parent=0
    _
  %s8 = ssub.s32 1, %s6
  %s9 = scalar_select 0, %s8, %s6
  $region1: #{tpu_custom_call.1} parent=0
    #allocation2 [shape = 'u8[4096]{0}', space=vmem, size = 0x1000, scoped, tag = 'input window, operand 0, single buffered']
    #allocation3 [shape = 's32[1]{0}', space=sflag, size = 0x4, scoped, tag = 'scoped memory for tpu_custom_call.1']
    #allocation4 [shape = 's32[1]{0}', space=sflag, size = 0x4, scoped, tag = 'scoped memory for tpu_custom_call.1']
    #allocation5 [shape = 'u8[8192]{0}', space=vmem, size = 0x2000, scoped, tag = 'input window, operand 1, single buffered']
    #allocation6 [shape = 's32[1]{0}', space=sflag, size = 0x4, scoped, tag = 'scoped memory for tpu_custom_call.1']
    #allocation7 [shape = 'u8[16384]{0}', space=vmem, size = 0x4000, scoped, tag = 'input window, operand 3, single buffered']
    #allocation8 [shape = 'u8[8192]{0}', space=vmem, size = 0x2000, scoped, tag = 'output window, operand 0, single buffered']
    %10 = vsyncpa [#allocation3], 0
    %11 = vsyncpa [#allocation6], 0
    %12 = vsyncpa [#allocation4], 0
    // Predicated region
    $region2: #{tpu_custom_call.1} parent=1 // pred_check
      _
    $region3: #{tpu_custom_call.1} parent=1 // pred_check_branch
      %14 = sbr.rel (0) target = $region5
    $region4: #{tpu_custom_call.1} parent=1 // pred_region
      %s16 = ssub.s32 128, 128
      %17 = vsyncadd [#allocation3], %s16
      %s18 = sshll.u32 [#allocation2], 4
      %s19 = int_to_ptr.vmem [resolvable:$true] %s18
      %24 = dma.hbm_to_vmem [thread:$0]  %s0, 128, %s19, [#allocation3], 64, 64, 4
    $region5: #{tpu_custom_call.1} parent=1 // pred_fallthru
      _
    // Predicated region
    $region6: #{tpu_custom_call.1} parent=1 // pred_check
      _
    $region7: #{tpu_custom_call.1} parent=1 // pred_check_branch
      %26 = sbr.rel (0) target = $region9
    $region8: #{tpu_custom_call.1} parent=1 // pred_region
      %s28 = ssub.s32 256, 256
      %29 = vsyncadd [#allocation6], %s28
      %s30 = sshll.u32 [#allocation5], 4
      %s31 = int_to_ptr.vmem [resolvable:$true] %s30
      %36 = dma.hbm_to_vmem [thread:$0]  %s1, 256, %s31, [#allocation6], 64, 64, 4
    $region9: #{tpu_custom_call.1} parent=1 // pred_fallthru
      _
    // Predicated region
    $region10: #{tpu_custom_call.1} parent=1 // pred_check
      _
    $region11: #{tpu_custom_call.1} parent=1 // pred_check_branch
      %38 = sbr.rel (0) target = $region13
    $region12: #{tpu_custom_call.1} parent=1 // pred_region
      _
    $region13: #{tpu_custom_call.1} parent=1 // pred_fallthru
      _
    // Predicated region
    $region14: #{tpu_custom_call.1} parent=1 // pred_check
      _
    $region15: #{tpu_custom_call.1} parent=1 // pred_check_branch
      %40 = sbr.rel (0) target = $region17
    $region16: #{tpu_custom_call.1} parent=1 // pred_region
      %s42 = ssub.s32 512, 512
      %43 = vsyncadd [#allocation6], %s42
      %s44 = sshll.u32 [#allocation7], 4
      %s45 = int_to_ptr.vmem [resolvable:$true] %s44
      %50 = dma.hbm_to_vmem [thread:$0]  %s3, 512, %s45, [#allocation6], 64, 64, 4
    $region17: #{tpu_custom_call.1} parent=1 // pred_fallthru
      _
    // Predicated region
    $region18: #{tpu_custom_call.1} parent=1 // pred_check
      _
    $region19: #{tpu_custom_call.1} parent=1 // pred_check_branch
      %52 = sbr.rel (0) target = $region21
    $region20: #{tpu_custom_call.1} parent=1 // pred_region
      _
    $region21: #{tpu_custom_call.1} parent=1 // pred_fallthru
      _
    // Predicated region
    $region22: #{tpu_custom_call.1} parent=1 // pred_check
      _
    $region23: #{tpu_custom_call.1} parent=1 // pred_check_branch
      %54 = sbr.rel (0) target = $region25
    $region24: #{tpu_custom_call.1} parent=1 // pred_region
      %55 = dma.done [#allocation3], 128
    $region25: #{tpu_custom_call.1} parent=1 // pred_fallthru
      _
    // Predicated region
    $region26: #{tpu_custom_call.1} parent=1 // pred_check
      _
    $region27: #{tpu_custom_call.1} parent=1 // pred_check_branch
      %57 = sbr.rel (0) target = $region29
    $region28: #{tpu_custom_call.1} parent=1 // pred_region
      %58 = dma.done [#allocation6], 256
    $region29: #{tpu_custom_call.1} parent=1 // pred_fallthru
      _
    // Predicated region
    $region30: #{tpu_custom_call.1} parent=1 // pred_check
      _
    $region31: #{tpu_custom_call.1} parent=1 // pred_check_branch
      %60 = sbr.rel (0) target = $region33
    $region32: #{tpu_custom_call.1} parent=1 // pred_region
      %61 = dma.done [#allocation6], 512
    $region33: #{tpu_custom_call.1} parent=1 // pred_fallthru
      _
    %v63 = vld [vmem:[#allocation2] sm:$0xf]
    %v64 = vld [vmem:[#allocation2 + $0x4] sm:$0xf]
    %v65 = vld [vmem:[#allocation5] sm:$0xf]
    %v66 = vld [vmem:[#allocation5 + $0x4] sm:$0xf]
    %v67 = vld [vmem:[#allocation5 + $0x8] sm:$0xf]
    %v68 = vld [vmem:[#allocation5 + $0xc] sm:$0xf]
    %v69 = vld [vmem:[%s2] sm:$0x1]
    %v71 = vlaneseq
    %v72 = vshrl.u32 %v71, 7
    %v73 = vsub.s32 0, %v72
    %v74 = vrot.slane %v69, %v73
    %v78 = vunpack.c.l.b16 %v63
    %v79 = vunpack.c.l.b16 %v64
    %v80 = vpack.c.b16 %v79, %v78
    %v85 = vunpack.c.l.b16 %v65
    %v86 = vunpack.c.l.b16 %v66
    %v87 = vunpack.c.l.b16 %v67
    %v88 = vunpack.c.l.b16 %v68
    %v89 = vpack.c.b16 %v86, %v85
    %v90 = vpack.c.b16 %v88, %v87
    %vm93 = vcmask 261120
    %v95 = vsel %vm93, %v80, 0
    %97 = vmatprep.subr.bf16.mxu0 0
    %98 = vmatpush1.bf16.msra.mxu0 0
    %99 = vmatprep.subr.bf16.mxu0 0
    %100 = vmatpush1.bf16.msra.mxu0 0
    %101 = vmatprep.subr.bf16.mxu0 0
    %102 = vmatpush1.bf16.msra.mxu0 0
    %103 = vmatprep.subr.bf16.mxu0 0
    %104 = vmatpush1.bf16.msra.mxu0 0
    %105 = vmatprep.subr.bf16.mxu0 0
    %106 = vmatpush1.bf16.msra.mxu0 0
    %107 = vmatprep.subr.bf16.mxu0 0
    %108 = vmatpush1.bf16.msra.mxu0 0
    %109 = vmatprep.subr.bf16.mxu0 0
    %110 = vmatpush1.bf16.msra.mxu0 %v90
    %111 = vmatprep.subr.bf16.mxu0 0
    %112 = vmatpush1.bf16.msra.mxu0 %v89
    %113 = vmatprep.subr.bf16.mxu0 0
    %114 = vmatpush2.bf16.msra.mxu0 0
    %115 = vmatprep.subr.bf16.mxu0 0
    %116 = vmatpush2.bf16.msra.mxu0 0
    %117 = vmatprep.subr.bf16.mxu0 0
    %118 = vmatpush2.bf16.msra.mxu0 0
    %119 = vmatprep.subr.bf16.mxu0 0
    %120 = vmatpush2.bf16.msra.mxu0 0
    %121 = vmatprep.subr.bf16.mxu0 0
    %122 = vmatpush2.bf16.msra.mxu0 0
    %123 = vmatprep.subr.bf16.mxu0 0
    %124 = vmatpush2.bf16.msra.mxu0 0
    %125 = vmatprep.subr.bf16.mxu0 0
    %126 = vmatpush2.bf16.msra.mxu0 0
    %127 = vmatprep.subr.bf16.mxu0 0
    %128 = vmatpush2.bf16.msra.mxu0 0
    %129 = vmatprep.mubr.bf16.mxu0 0
    %130 = vmatmul.mubr.bf16.gmra.mxu0 %v95
    %v131 = vpop.f32.mrf.mxu0
    %v132 = vadd.f32 %v74, %v131
    %v133 = vpop.f32.mrf.mxu0
    %v134 = vpop.f32.mrf.mxu0
    %v135 = vadd.f32 %v74, %v134
    %v136 = vpop.f32.mrf.mxu0
    %137 = vdwg.mxu0
    %v138 = vmax.f32 %v132, 0.0
    %v139 = vmax.f32 %v135, 0.0
    %v140 = vpack.c.bf16 %v139, %v138
    %v141 = vld [vmem:[#allocation7] sm:$0xf]
    %v142 = vld [vmem:[#allocation7 + $0x4] sm:$0xf]
    %v143 = vld [vmem:[#allocation7 + $0x8] sm:$0xf]
    %v144 = vld [vmem:[#allocation7 + $0xc] sm:$0xf]
    %v145 = vld [vmem:[#allocation7 + $0x10] sm:$0xf]
    %v146 = vld [vmem:[#allocation7 + $0x14] sm:$0xf]
    %v147 = vld [vmem:[#allocation7 + $0x18] sm:$0xf]
    %v148 = vld [vmem:[#allocation7 + $0x1c] sm:$0xf]
    %v149 = vld [vmem:[%s4] sm:$0x1]
    %v151 = vlaneseq
    %v152 = vshrl.u32 %v151, 7
    %v153 = vsub.s32 0, %v152
    %v154 = vrot.slane %v149, %v153
    %v164 = vunpack.c.l.b16 %v141
    %v165 = vunpack.c.l.b16 %v142
    %v166 = vunpack.c.l.b16 %v143
    %v167 = vunpack.c.l.b16 %v144
    %v168 = vunpack.c.l.b16 %v145
    %v169 = vunpack.c.l.b16 %v146
    %v170 = vunpack.c.l.b16 %v147
    %v171 = vunpack.c.l.b16 %v148
    %v172 = vpack.c.b16 %v165, %v164
    %v173 = vpack.c.b16 %v167, %v166
    %v174 = vpack.c.b16 %v169, %v168
    %v175 = vpack.c.b16 %v171, %v170
    %vm180 = vcmask 523264
    %v182 = vsel %vm180, %v140, 0
    %184 = vmatprep.subr.bf16.mxu0 0
    %185 = vmatpush1.bf16.msra.mxu0 0
    %186 = vmatprep.subr.bf16.mxu0 0
    %187 = vmatpush1.bf16.msra.mxu0 0
    %188 = vmatprep.subr.bf16.mxu0 0
    %189 = vmatpush1.bf16.msra.mxu0 0
    %190 = vmatprep.subr.bf16.mxu0 0
    %191 = vmatpush1.bf16.msra.mxu0 0
    %192 = vmatprep.subr.bf16.mxu0 0
    %193 = vmatpush1.bf16.msra.mxu0 %v175
    %194 = vmatprep.subr.bf16.mxu0 0
    %195 = vmatpush1.bf16.msra.mxu0 %v174
    %196 = vmatprep.subr.bf16.mxu0 0
    %197 = vmatpush1.bf16.msra.mxu0 %v173
    %198 = vmatprep.subr.bf16.mxu0 0
    %199 = vmatpush1.bf16.msra.mxu0 %v172
    %200 = vmatprep.subr.bf16.mxu0 0
    %201 = vmatpush2.bf16.msra.mxu0 0
    %202 = vmatprep.subr.bf16.mxu0 0
    %203 = vmatpush2.bf16.msra.mxu0 0
    %204 = vmatprep.subr.bf16.mxu0 0
    %205 = vmatpush2.bf16.msra.mxu0 0
    %206 = vmatprep.subr.bf16.mxu0 0
    %207 = vmatpush2.bf16.msra.mxu0 0
    %208 = vmatprep.subr.bf16.mxu0 0
    %209 = vmatpush2.bf16.msra.mxu0 0
    %210 = vmatprep.subr.bf16.mxu0 0
    %211 = vmatpush2.bf16.msra.mxu0 0
    %212 = vmatprep.subr.bf16.mxu0 0
    %213 = vmatpush2.bf16.msra.mxu0 0
    %214 = vmatprep.subr.bf16.mxu0 0
    %215 = vmatpush2.bf16.msra.mxu0 0
    %216 = vmatprep.mubr.bf16.mxu0 0
    %217 = vmatmul.mubr.bf16.gmra.mxu0 %v182
    %v218 = vpop.f32.mrf.mxu0
    %v219 = vadd.f32 %v154, %v218
    %v220 = vpop.f32.mrf.mxu0
    %v221 = vpop.f32.mrf.mxu0
    %v222 = vadd.f32 %v154, %v221
    %v223 = vpop.f32.mrf.mxu0
    %224 = vdwg.mxu0
    %v225 = vlaneseq
    %v226 = vand.u32 %v225, 127
    %vm227 = vcmp.lt.s32.totalorder %v226, 16
    %v228 = vsel %vm227, %v219, -1e+30
    %v229 = vsel %vm227, %v222, -1e+30
    %230 = vmax.xlane.f32.xlu0 %v228
    %v231 = vpop.xlane.xlu0 %230
    %232 = vmax.xlane.f32.xlu0 %v229
    %v233 = vpop.xlane.xlu0 %232
    %v234 = vsub.f32 %v228, %v231
    %v235 = vsub.f32 %v229, %v233
    %v236 = vmul.f32 %v234, 1.442695
    %v237 = vpow.pop %v236
    %v238 = vmul.f32 %v235, 1.442695
    %v239 = vpow.pop %v238
    %240 = vadd.xlane.f32.xlu0 %v237
    %v241 = vpop.xlane.xlu0 %240
    %242 = vadd.xlane.f32.xlu0 %v239
    %v243 = vpop.xlane.xlu0 %242
    %v244 = vrcp.pop %v241
    %v245 = vmul.f32 %v237, %v244
    %v246 = vrcp.pop %v243
    %v247 = vmul.f32 %v239, %v246
    %248 = vst [vmem:[#allocation8] sm:$0xff] %v245
    %249 = vst [vmem:[#allocation8 + $0x8] sm:$0xff] %v247
    // Predicated region
    $region34: #{tpu_custom_call.1} parent=1 // pred_check
      _
    $region35: #{tpu_custom_call.1} parent=1 // pred_check_branch
      %251 = sbr.rel (0) target = $region37
    $region36: #{tpu_custom_call.1} parent=1 // pred_region
      %s253 = ssub.s32 256, 256
      %254 = vsyncadd [#allocation4], %s253
      %s255 = sshll.u32 [#allocation8], 4
      %s256 = int_to_ptr.vmem [resolvable:$true] %s255
      %261 = dma.vmem_to_hbm [thread:$0]  %s256, 256, %s5, [#allocation4], 128, 128, 8
    $region37: #{tpu_custom_call.1} parent=1 // pred_fallthru
      _
    // Predicated region
    $region38: #{tpu_custom_call.1} parent=1 // pred_check
      _
    $region39: #{tpu_custom_call.1} parent=1 // pred_check_branch
      %263 = sbr.rel (0) target = $region41
    $region40: #{tpu_custom_call.1} parent=1 // pred_region
      %264 = dma.done [#allocation4], 256
    $region41: #{tpu_custom_call.1} parent=1 // pred_fallthru
      _
    %265 = vsyncpa [#allocation3], 1
    %266 = vsyncpa [#allocation6], 1
    %267 = vsyncpa [#allocation4], 1

</llo_original>
